<compile_context>
chip_gen: v7x
topology: tpu7x:2x2x1
jax: 0.10.0
libtpu: 0.0.40
codegen_flags: <defaults>
</compile_context>

<pallas_src>
import types
from functools import partial

import jax
import jax.numpy as jnp
from jax.experimental import pallas as pl
from jax.experimental.pallas import tpu as pltpu

LANES = 128                    # lane width (last dim)
SUBLANES = 8                   # f32 sublane tile
GROUP_ROWS = 64                # rows folded per fori_loop step (8 f32 vregs/input)
FOLD_UNROLL = 4                # unroll factor for the in-kernel fold loop
TARGET_TILE_BYTES = 2 << 20    # ~2 MiB per input per grid step
SPLIT_ROWS = 512               # rows >= 2*SPLIT_ROWS -> force grid >= 2 (v7x)


def _round_up(x, m):
    return ((x + m - 1) // m) * m


def _round_down(x, m):
    return (x // m) * m


def _l1_partial_kernel(pred_ref, tgt_ref, out_ref, *, tile_rows, total_rows,
                       need_mask, group_rows, unroll):
    """out[i] = (8,128) per-lane partial sums of |pred - tgt| for this block.

    The fold is a fori_loop over `group_rows`-row groups accumulating into one
    (8,128) f32 value, so only a handful of vregs are live at a time.  The
    single cross-lane reduce happens once in the wrapper over grid*4KiB of
    partials.
    """
    n_groups = tile_rows // group_rows
    zero = jnp.zeros((SUBLANES, LANES), jnp.float32)

    def _group_diff(g):
        r0 = pl.multiple_of(g * group_rows, group_rows)
        a = pred_ref[pl.ds(r0, group_rows), :].astype(jnp.float32)
        b = tgt_ref[pl.ds(r0, group_rows), :].astype(jnp.float32)
        return r0, jnp.abs(a - b)

    def _fold(d, acc):
        return acc + jnp.sum(
            d.reshape(group_rows // SUBLANES, SUBLANES, LANES), axis=0)

    def unmasked_body(g, acc):
        _, d = _group_diff(g)
        return _fold(d, acc)

    def run_unmasked():
        out_ref[0] = jax.lax.fori_loop(0, n_groups, unmasked_body, zero,
                                       unroll=unroll)

    if not need_mask:
        run_unmasked()
        return

    i = pl.program_id(0)
    last = pl.num_programs(0) - 1

    @pl.when(i < last)
    def _():
        run_unmasked()

    @pl.when(i == last)
    def _():
        # Only the last block has out-of-bounds rows (undefined data, possibly
        # NaN/Inf) -> mask them with a select (NOT a multiply) by global row id.
        base = i * tile_rows

        def masked_body(g, acc):
            r0, d = _group_diff(g)
            row_ids = (base + r0) + jax.lax.broadcasted_iota(
                jnp.int32, (group_rows, LANES), 0)
            d = jnp.where(row_ids < total_rows, d, 0.0)
            return _fold(d, acc)

        out_ref[0] = jax.lax.fori_loop(0, n_groups, masked_body, zero,
                                       unroll=unroll)


def l1_loss_pallas(pred_energy: jax.Array, target_y: jax.Array) -> jax.Array:
    """Mean absolute error between two same-shaped arrays (returns f32 scalar)."""
    assert pred_energy.shape == target_y.shape, "L1Loss expects matching shapes"
    n = pred_energy.size
    if n == 0:
        # torch.nn.L1Loss(reduction='mean') on empty input returns NaN.
        return jnp.float32(jnp.nan)

    p = pred_energy.reshape(-1)
    t = target_y.reshape(-1)

    # Kernel consumes the 128-aligned prefix as a (rows, 128) view; the <128
    # element tail (and very small inputs) go through a tiny jnp epilogue.
    main = _round_down(n, LANES)
    rows = main // LANES

    if rows < SUBLANES:  # n < 1024: a kernel launch is not worth it
        d = p.astype(jnp.float32) - t.astype(jnp.float32)
        return (jnp.sum(jnp.abs(d)) / jnp.float32(n)).astype(jnp.float32)

    # Copy-free reshape when n is 128-aligned; otherwise slice off the prefix.
    # TODO(synk): for huge non-128-aligned n the prefix slice may still cost one
    # copy per input; a fully copy-free path needs pl.ANY refs + manual DMA with
    # a flat-index mask.
    p2d = (p if main == n else p[:main]).reshape(rows, LANES)
    t2d = (t if main == n else t[:main]).reshape(rows, LANES)

    # ~2 MiB per input per step (byte-based so bf16 gets 2x the rows).
    itemsize = max(p2d.dtype.itemsize, t2d.dtype.itemsize)
    max_tile_rows = max(GROUP_ROWS,
                        _round_down(TARGET_TILE_BYTES // (LANES * itemsize),
                                    GROUP_ROWS))

    if rows >= 2 * SPLIT_ROWS:
        # Large input: cap at ~2 MiB/input but never fewer than 2 grid steps so
        # the "parallel" axis can span both v7x TensorCores.
        tile_rows = min(max_tile_rows, _round_up(pl.cdiv(rows, 2), GROUP_ROWS))
        group_rows = GROUP_ROWS
    else:
        # Small / medium input: one or two blocks; keep tile_rows <= rows so no
        # block lies fully outside the array.
        tile_rows = _round_down(rows, SUBLANES)
        group_rows = GROUP_ROWS if tile_rows % GROUP_ROWS == 0 else SUBLANES

    grid0 = pl.cdiv(rows, tile_rows)
    need_mask = (rows % tile_rows) != 0
    unroll = max(1, min(FOLD_UNROLL, tile_rows // group_rows))

    kernel = partial(_l1_partial_kernel, tile_rows=tile_rows, total_rows=rows,
                     need_mask=need_mask, group_rows=group_rows, unroll=unroll)

    cost = pl.CostEstimate(
        flops=3 * main,                      # sub + abs + accumulate
        transcendentals=0,
        bytes_accessed=main * (p2d.dtype.itemsize + t2d.dtype.itemsize)
        + grid0 * SUBLANES * LANES * 4,
    )

    partials = pl.pallas_call(
        kernel,
        out_shape=jax.ShapeDtypeStruct((grid0, SUBLANES, LANES), jnp.float32),
        grid_spec=pltpu.PrefetchScalarGridSpec(
            num_scalar_prefetch=0,
            grid=(grid0,),
            in_specs=[
                pl.BlockSpec((tile_rows, LANES), lambda i: (i, 0)),
                pl.BlockSpec((tile_rows, LANES), lambda i: (i, 0)),
            ],
            out_specs=pl.BlockSpec((1, SUBLANES, LANES), lambda i: (i, 0, 0)),
        ),
        compiler_params=pltpu.CompilerParams(
            # Each grid step writes its own partial -> fully parallel; multi-TC
            # chips (v7x) can split the HBM stream across cores.
            dimension_semantics=("parallel",),
        ),
        cost_estimate=cost,
    )(p2d, t2d)

    # Tiny epilogue: cross-lane reduce of grid*4KiB of partials (+ the <128
    # element tail) and the mean over the ORIGINAL element count.
    total = jnp.sum(partials)
    if main != n:
        tail = jnp.abs(p[main:].astype(jnp.float32)
                       - t[main:].astype(jnp.float32))
        total = total + jnp.sum(tail)
    return (total / jnp.float32(n)).astype(jnp.float32)


class L1LossPallas:
    """Mirrors the PyTorch module's forward(gt_batch, pred) signature."""

    def __call__(self, gt_batch, pred):
        return l1_loss_pallas(pred["energy"], gt_batch.y)


if __name__ == "__main__":
    key = jax.random.PRNGKey(0)
    k1, k2, k3, k4 = jax.random.split(key, 4)

    # Module-consistent shapes: per-graph energies for a batch of graphs.
    # n=2100 exercises: 128-aligned prefix through the kernel (16 rows, 1 grid
    # step, no mask) + the 52-element tail in the wrapper epilogue.
    n_graphs = 2100
    y = jax.random.normal(k1, (n_graphs,), dtype=jnp.float32)        # gt_batch.y
    energy = jax.random.normal(k2, (n_graphs,), dtype=jnp.float32)   # pred['energy']

    gt_batch = types.SimpleNamespace(y=y)
    pred = {"energy": energy}

    loss_fn = L1LossPallas()
    out = jax.block_until_ready(loss_fn(gt_batch, pred))
    ref = jnp.mean(jnp.abs(energy - y))
    assert jnp.allclose(out, ref, rtol=1e-5, atol=1e-6), (out, ref)

    # Second check: 128-aligned input (copy-free reshape), grid = 2 ("parallel"
    # axis spans both v7x TCs), ragged-row mask only in the last grid step.
    n2 = 640_000
    y2 = jax.random.normal(k3, (n2,), dtype=jnp.float32)
    e2 = jax.random.normal(k4, (n2,), dtype=jnp.float32)
    out2 = jax.block_until_ready(l1_loss_pallas(e2, y2))
    ref2 = jnp.mean(jnp.abs(e2 - y2))
    assert jnp.allclose(out2, ref2, rtol=1e-4, atol=1e-6), (out2, ref2)

    print("KERNEL_OK")
</pallas_src>

<mosaic_0001>
module attributes {stable_mosaic.version = 11 : i64} {
  func.func @_l1_partial_kernel(%arg0: i32, %arg1: memref<16x128xf32, #tpu.memory_space<vmem>>, %arg2: memref<16x128xf32, #tpu.memory_space<vmem>>, %arg3: memref<1x8x128xf32, #tpu.memory_space<vmem>>) attributes {dimension_semantics = [#tpu.dimension_semantics<parallel>], iteration_bounds = array<i64: 1>, scalar_prefetch = 0 : i64, scratch_operands = 0 : i64, tpu.core_type = #tpu.core_type<tc>, window_params = [{transform_indices = @transform_0, window_bounds = array<i64: 16, 128>}, {transform_indices = @transform_1, window_bounds = array<i64: 16, 128>}, {transform_indices = @transform_2, window_bounds = array<i64: 1, 8, 128>}]} {
    %cst = arith.constant 0.000000e+00 : f32
    %0 = vector.broadcast %cst : f32 to vector<8x128xf32>
    %c0_i32 = arith.constant 0 : i32
    %c8_i32 = arith.constant 8 : i32
    %1 = arith.muli %c0_i32, %c8_i32 : i32
    %2 = tpu.assume_multiple %1, 8 : i32
    %3 = arith.index_cast %2 : i32 to index
    %c0 = arith.constant 0 : index
    %4 = vector.load %arg1[%3, %c0] : memref<16x128xf32, #tpu.memory_space<vmem>>, vector<8x128xf32>
    %5 = arith.index_cast %2 : i32 to index
    %c0_0 = arith.constant 0 : index
    %6 = vector.load %arg2[%5, %c0_0] : memref<16x128xf32, #tpu.memory_space<vmem>>, vector<8x128xf32>
    %7 = arith.subf %4, %6 : vector<8x128xf32>
    %8 = math.absf %7 : vector<8x128xf32>
    %9 = vector.shape_cast %8 : vector<8x128xf32> to vector<1x8x128xf32>
    %cst_1 = arith.constant dense<0.000000e+00> : vector<8x128xf32>
    %10 = vector.multi_reduction <add>, %9, %cst_1 [0] : vector<1x8x128xf32> to vector<8x128xf32>
    %11 = arith.addf %0, %10 : vector<8x128xf32>
    %c1_i32 = arith.constant 1 : i32
    %c8_i32_2 = arith.constant 8 : i32
    %12 = arith.muli %c1_i32, %c8_i32_2 : i32
    %13 = tpu.assume_multiple %12, 8 : i32
    %14 = arith.index_cast %13 : i32 to index
    %c0_3 = arith.constant 0 : index
    %15 = vector.load %arg1[%14, %c0_3] : memref<16x128xf32, #tpu.memory_space<vmem>>, vector<8x128xf32>
    %16 = arith.index_cast %13 : i32 to index
    %c0_4 = arith.constant 0 : index
    %17 = vector.load %arg2[%16, %c0_4] : memref<16x128xf32, #tpu.memory_space<vmem>>, vector<8x128xf32>
    %18 = arith.subf %15, %17 : vector<8x128xf32>
    %19 = math.absf %18 : vector<8x128xf32>
    %20 = vector.shape_cast %19 : vector<8x128xf32> to vector<1x8x128xf32>
    %cst_5 = arith.constant dense<0.000000e+00> : vector<8x128xf32>
    %21 = vector.multi_reduction <add>, %20, %cst_5 [0] : vector<1x8x128xf32> to vector<8x128xf32>
    %22 = arith.addf %11, %21 : vector<8x128xf32>
    %c2_i32 = arith.constant 2 : i32
    %c0_6 = arith.constant 0 : index
    %c0_7 = arith.constant 0 : index
    %c0_8 = arith.constant 0 : index
    %23 = vector.load %arg3[%c0_6, %c0_7, %c0_8] : memref<1x8x128xf32, #tpu.memory_space<vmem>>, vector<1x8x128xf32>
    %24 = vector.shape_cast %23 : vector<1x8x128xf32> to vector<8x128xf32>
    %25 = vector.shape_cast %22 : vector<8x128xf32> to vector<1x8x128xf32>
    tpu.vector_store %arg3[%c0_6, %c0_7, %c0_8], %25 {strides = array<i32>} : memref<1x8x128xf32, #tpu.memory_space<vmem>>, vector<1x8x128xf32>,
    return
  }
  func.func @transform_0(%arg0: i32) -> (i32, i32) {
    %c0_i32 = arith.constant 0 : i32
    %c0_i32_0 = arith.constant 0 : i32
    return %arg0, %c0_i32 : i32, i32
  }
  func.func @transform_1(%arg0: i32) -> (i32, i32) {
    %c0_i32 = arith.constant 0 : i32
    %c0_i32_0 = arith.constant 0 : i32
    return %arg0, %c0_i32 : i32, i32
  }
  func.func @transform_2(%arg0: i32) -> (i32, i32, i32) {
    %c0_i32 = arith.constant 0 : i32
    %c0_i32_0 = arith.constant 0 : i32
    %c0_i32_1 = arith.constant 0 : i32
    return %arg0, %c0_i32, %c0_i32_0 : i32, i32, i32
  }
}

</mosaic_0001>

<llo_original>
// kernel: tpu_custom_call.1
$region0: #{tpu_custom_call.1}
  #allocation0 [shape = 'u32[]', space=smem, size = 0x4, offset = 0x4, fixed_abs, tag = 'smem constant byte address 0x4 - core index']
  #allocation1 [shape = 'u32[144,128]{1,0:T(1,128)}', space=vmem, size = 0x12000, scoped, tag = 'internal scratch']
  %s0 = inlined_call_operand.hbm [shape: f32[16,128], index: 0, kind: input, shape index: {}]
  %s1 = inlined_call_operand.hbm [shape: f32[16,128], index: 1, kind: input, shape index: {}]
  %s2 = inlined_call_operand.hbm [shape: f32[1,8,128], index: 2, kind: output, shape index: {}]
  %s3 = sld [smem:[#allocation0]]
  $region26: #{tpu_custom_call.1} parent=0
    _
  %s5 = ssub.s32 1, %s3
  %s6 = scalar_select 0, %s5, %s3
  $region1: #{tpu_custom_call.1} parent=0
    #allocation2 [shape = 'u8[8192]{0}', space=vmem, size = 0x2000, scoped, tag = 'input window, operand 0, single buffered']
    #allocation3 [shape = 's32[1]{0}', space=sflag, size = 0x4, scoped, tag = 'scoped memory for tpu_custom_call.1']
    #allocation4 [shape = 's32[1]{0}', space=sflag, size = 0x4, scoped, tag = 'scoped memory for tpu_custom_call.1']
    #allocation5 [shape = 'u8[8192]{0}', space=vmem, size = 0x2000, scoped, tag = 'input window, operand 1, single buffered']
    #allocation6 [shape = 's32[1]{0}', space=sflag, size = 0x4, scoped, tag = 'scoped memory for tpu_custom_call.1']
    #allocation7 [shape = 'u8[4096]{0}', space=vmem, size = 0x1000, scoped, tag = 'output window, operand 0, single buffered']
    %7 = vsyncpa [#allocation3], 0
    %8 = vsyncpa [#allocation6], 0
    %9 = vsyncpa [#allocation4], 0
    // Predicated region
    $region2: #{tpu_custom_call.1} parent=1 // pred_check
      _
    $region3: #{tpu_custom_call.1} parent=1 // pred_check_branch
      %11 = sbr.rel (0) target = $region5
    $region4: #{tpu_custom_call.1} parent=1 // pred_region
      %s13 = ssub.s32 256, 256
      %14 = vsyncadd [#allocation3], %s13
      %s15 = sshll.u32 [#allocation2], 4
      %s16 = int_to_ptr.vmem [resolvable:$true] %s15
      %21 = dma.hbm_to_vmem [thread:$0]  %s0, 256, %s16, [#allocation3], 128, 128, 8
    $region5: #{tpu_custom_call.1} parent=1 // pred_fallthru
      _
    // Predicated region
    $region6: #{tpu_custom_call.1} parent=1 // pred_check
      _
    $region7: #{tpu_custom_call.1} parent=1 // pred_check_branch
      %23 = sbr.rel (0) target = $region9
    $region8: #{tpu_custom_call.1} parent=1 // pred_region
      %s25 = ssub.s32 256, 256
      %26 = vsyncadd [#allocation6], %s25
      %s27 = sshll.u32 [#allocation5], 4
      %s28 = int_to_ptr.vmem [resolvable:$true] %s27
      %33 = dma.hbm_to_vmem [thread:$0]  %s1, 256, %s28, [#allocation6], 128, 128, 8
    $region9: #{tpu_custom_call.1} parent=1 // pred_fallthru
      _
    // Predicated region
    $region10: #{tpu_custom_call.1} parent=1 // pred_check
      _
    $region11: #{tpu_custom_call.1} parent=1 // pred_check_branch
      %35 = sbr.rel (0) target = $region13
    $region12: #{tpu_custom_call.1} parent=1 // pred_region
      %36 = dma.done [#allocation3], 256
    $region13: #{tpu_custom_call.1} parent=1 // pred_fallthru
      _
    // Predicated region
    $region14: #{tpu_custom_call.1} parent=1 // pred_check
      _
    $region15: #{tpu_custom_call.1} parent=1 // pred_check_branch
      %38 = sbr.rel (0) target = $region17
    $region16: #{tpu_custom_call.1} parent=1 // pred_region
      %39 = dma.done [#allocation6], 256
    $region17: #{tpu_custom_call.1} parent=1 // pred_fallthru
      _
    %v40 = vld [vmem:[#allocation2] sm:$0xff]
    %v41 = vld [vmem:[#allocation5] sm:$0xff]
    %v42 = vsub.f32 %v40, %v41
    %v43 = vand.u32 2147483647, %v42
    %v44 = vadd.f32 %v43, 0.0
    %v45 = vadd.f32 %v44, 0.0
    %s46 = scalar_lea.vmem [#allocation2], 8
    %v47 = vld [vmem:[%s46] sm:$0xff]
    %s48 = scalar_lea.vmem [#allocation5], 8
    %v49 = vld [vmem:[%s48] sm:$0xff]
    %v50 = vsub.f32 %v47, %v49
    %v51 = vand.u32 2147483647, %v50
    %v52 = vadd.f32 %v51, 0.0
    %v53 = vadd.f32 %v45, %v52
    %54 = vst [vmem:[#allocation7] sm:$0xff] %v53
    // Predicated region
    $region18: #{tpu_custom_call.1} parent=1 // pred_check
      _
    $region19: #{tpu_custom_call.1} parent=1 // pred_check_branch
      %56 = sbr.rel (0) target = $region21
    $region20: #{tpu_custom_call.1} parent=1 // pred_region
      %s58 = ssub.s32 128, 128
      %59 = vsyncadd [#allocation4], %s58
      %s61 = sshll.u32 [#allocation7], 4
      %s62 = int_to_ptr.vmem [resolvable:$true] %s61
      %64 = dma.vmem_to_hbm [thread:$0]  %s62, 128, %s2, [#allocation4]
    $region21: #{tpu_custom_call.1} parent=1 // pred_fallthru
      _
    // Predicated region
    $region22: #{tpu_custom_call.1} parent=1 // pred_check
      _
    $region23: #{tpu_custom_call.1} parent=1 // pred_check_branch
      %66 = sbr.rel (0) target = $region25
    $region24: #{tpu_custom_call.1} parent=1 // pred_region
      %67 = dma.done [#allocation4], 128
    $region25: #{tpu_custom_call.1} parent=1 // pred_fallthru
      _
    %68 = vsyncpa [#allocation3], 1
    %69 = vsyncpa [#allocation6], 1
    %70 = vsyncpa [#allocation4], 1

</llo_original>
